<compile_context>
chip_gen: v6e
topology: v6e:2x2x1
jax: 0.10.0
libtpu: 0.0.40
codegen_flags: <defaults>
</compile_context>

<pallas_src>
import jax
import jax.numpy as jnp
import numpy as np
from jax import lax
from jax.experimental import pallas as pl
from jax.experimental.pallas import tpu as pltpu

C = 2        # number of class variables (keys of `imgs`)
B = 8        # batch size
D = 10       # values per class variable (softmax dim)
P = 4        # number of propositions (SDD query atoms)
P_PAD = 128  # lane-padded proposition axis -> unmasked stores
EPS = 1e-12


def _constraint_kernel(x_ref, tcls_ref, mflat_ref, tprop_ref, out_ref):
    CB = C * B
    x = x_ref[...]                                              # [C*B, D]

    # ---- 1) fused temperature-calibrated softmax over ALL class variables ---
    # Per-row temperature column from SMEM scalars; one [CB,1] divide instead
    # of full-tile divides. (t <= 0 overflows like the PyTorch module does.)
    row = lax.broadcasted_iota(jnp.int32, (CB, 1), 0)
    t_col = jnp.broadcast_to(tcls_ref[C - 1], (CB, 1)).astype(jnp.float32)
    for c in range(C - 2, -1, -1):                              # C is tiny & static
        t_col = jnp.where(row < (c + 1) * B, tcls_ref[c], t_col)
    t_col = jnp.maximum(t_col, 0.0) + EPS                       # relu(temp) + eps
    inv_t = 1.0 / t_col                                         # exact reciprocal

    z = x * inv_t
    z = z - jnp.max(z, axis=-1, keepdims=True)
    e = jnp.exp(z)
    probs = e * (1.0 / jnp.sum(e, axis=-1, keepdims=True))      # [C*B, D]
    p0 = probs[:B, :]                                           # class var 0 [B, D]
    p1 = probs[B:, :]                                           # class var 1 [B, D]

    # ---- 2) ProbSemiring circuit: one fused contraction + selector reduce ---
    # tmp[b, p*D + k] = sum_i p0[b, i] * M[p, i, k]
    tmp = jnp.dot(p0, mflat_ref[...], preferred_element_type=jnp.float32)   # [B, P*D]
    p1_tiled = jnp.concatenate([p1] * P, axis=-1)                           # [B, P*D]
    prod = tmp * p1_tiled
    # selector sel[r, c] = 1 iff c*D <= r < (c+1)*D ; its extra zero columns
    # pad q out to P_PAD lanes so the final store is a full, unmasked vst.
    r_id = lax.broadcasted_iota(jnp.int32, (P * D, P_PAD), 0)
    c_id = lax.broadcasted_iota(jnp.int32, (P * D, P_PAD), 1)
    sel = jnp.logical_and(r_id >= c_id * D, r_id < c_id * D + D).astype(jnp.float32)
    q = jnp.dot(prod, sel, preferred_element_type=jnp.float32)              # [B, P_PAD]

    # ---- 3) proposition calibration: sigmoid(logit(q, eps) / t_props) -------
    inv_tp = 1.0 / (jnp.maximum(tprop_ref[...], 0.0) + EPS)                 # [1, P_PAD]
    qc = jnp.clip(q, EPS, 1.0 - EPS)                            # torch.logit eps-clamp
    logit = jnp.log(qc) - jnp.log1p(-qc)
    out_ref[...] = 1.0 / (1.0 + jnp.exp(-logit * inv_tp))


def constraint_problog_forward(imgs, classes_temp_logits, props_temp_logits, masks):
    """imgs: dict {class_name: [B, D] logits}. Returns dict {prop_name: [B]}."""
    keys = sorted(imgs.keys())
    # stack class variables along the batch/sublane axis: rows [c*B:(c+1)*B]
    x = jnp.concatenate([imgs[k].astype(jnp.float32) for k in keys], axis=0)  # [C*B, D]
    # flatten masks [P, D, D] -> [D, P*D] with mflat[i, p*D+k] = masks[p, i, k]
    mflat = jnp.transpose(masks.astype(jnp.float32), (1, 0, 2)).reshape(D, P * D)
    # lane-pad the proposition temperatures (pad value 1.0 is harmless/discarded)
    tprop_pad = jnp.ones((1, P_PAD), dtype=jnp.float32)
    tprop_pad = tprop_pad.at[0, :P].set(props_temp_logits.astype(jnp.float32))

    out = pl.pallas_call(
        _constraint_kernel,
        out_shape=jax.ShapeDtypeStruct((B, P_PAD), jnp.float32),
        in_specs=[
            pl.BlockSpec(memory_space=pltpu.MemorySpace.VMEM),   # x       [C*B, D]
            pl.BlockSpec(memory_space=pltpu.MemorySpace.SMEM),   # t_class [C]
            pl.BlockSpec(memory_space=pltpu.MemorySpace.VMEM),   # mflat   [D, P*D]
            pl.BlockSpec(memory_space=pltpu.MemorySpace.VMEM),   # t_props [1, P_PAD]
        ],
        out_specs=pl.BlockSpec(memory_space=pltpu.MemorySpace.VMEM),
    )(x, classes_temp_logits.astype(jnp.float32), mflat, tprop_pad)

    prop_names = sorted(f"p{j}" for j in range(P))
    return {name: out[:, j] for j, name in enumerate(prop_names)}


def _reference_forward(imgs, classes_temp_logits, props_temp_logits, masks):
    """Pure-JAX reference of the same semantics (correctness check)."""
    keys = sorted(imgs.keys())
    x = jnp.stack([imgs[k] for k in keys], axis=0).astype(jnp.float32)
    t = jnp.maximum(classes_temp_logits, 0.0) + EPS
    p = jax.nn.softmax(x / t[:, None, None], axis=-1)
    q = jnp.einsum("bi,pik,bk->bp", p[0], masks, p[1])
    tp = jnp.maximum(props_temp_logits, 0.0) + EPS
    qc = jnp.clip(q, EPS, 1.0 - EPS)
    logit = jnp.log(qc) - jnp.log1p(-qc)
    return jax.nn.sigmoid(logit / tp[None, :])


if __name__ == "__main__":
    key = jax.random.PRNGKey(0)
    k0, k1 = jax.random.split(key)

    # dict of class-variable logits (the `imgs` argument)
    imgs = {
        "c0": jax.random.normal(k0, (B, D), dtype=jnp.float32),
        "c1": jax.random.normal(k1, (B, D), dtype=jnp.float32),
    }

    # parameters, initialized exactly as in __init__: torch.ones(...)
    classes_temp_logits = jnp.ones((C,), dtype=jnp.float32)
    props_temp_logits = jnp.ones((P,), dtype=jnp.float32)

    # deterministic synthetic circuit: proposition j <=> (v0 + v1) mod P == j
    ii, kk = np.meshgrid(np.arange(D), np.arange(D), indexing="ij")
    masks = jnp.asarray(
        np.stack([((ii + kk) % P == j).astype(np.float32) for j in range(P)], axis=0)
    )  # [P, D, D]

    out = constraint_problog_forward(imgs, classes_temp_logits, props_temp_logits, masks)
    out = {k: jax.block_until_ready(v) for k, v in out.items()}

    ref = _reference_forward(imgs, classes_temp_logits, props_temp_logits, masks)
    got = jnp.stack([out[f"p{j}"] for j in range(P)], axis=-1)
    np.testing.assert_allclose(np.asarray(got), np.asarray(ref), rtol=1e-5, atol=1e-5)

    print("KERNEL_OK")
</pallas_src>

<mosaic_0001>
module attributes {stable_mosaic.version = 11 : i64} {
  func.func @_constraint_kernel(%arg0: memref<16x10xf32, #tpu.memory_space<vmem>>, %arg1: memref<2xf32, #tpu.memory_space<smem>>, %arg2: memref<10x40xf32, #tpu.memory_space<vmem>>, %arg3: memref<1x128xf32, #tpu.memory_space<vmem>>, %arg4: memref<8x128xf32, #tpu.memory_space<vmem>>) attributes {dimension_semantics = [], scalar_prefetch = 0 : i64, scratch_operands = 0 : i64, tpu.core_type = #tpu.core_type<tc>} {
    %c0 = arith.constant 0 : index
    %c0_0 = arith.constant 0 : index
    %0 = vector.load %arg0[%c0, %c0_0] : memref<16x10xf32, #tpu.memory_space<vmem>>, vector<16x10xf32>
    %1 = tpu.iota {dimensions = array<i32: 0>} : vector<16x1xi32>
    %c1 = arith.constant 1 : index
    %2 = memref.load %arg1[%c1] : memref<2xf32, #tpu.memory_space<smem>>
    %3 = vector.broadcast %2 : f32 to vector<16x1xf32>
    %c8_i32 = arith.constant 8 : i32
    %4 = vector.broadcast %c8_i32 : i32 to vector<16x1xi32>
    %5 = arith.cmpi slt, %1, %4 : vector<16x1xi32>
    %c0_1 = arith.constant 0 : index
    %6 = memref.load %arg1[%c0_1] : memref<2xf32, #tpu.memory_space<smem>>
    %7 = vector.broadcast %6 : f32 to vector<16x1xf32>
    %8 = arith.select %5, %7, %3 : vector<16x1xi1>, vector<16x1xf32>
    %cst = arith.constant 0.000000e+00 : f32
    %9 = vector.broadcast %cst : f32 to vector<16x1xf32>
    %10 = arith.maximumf %8, %9 : vector<16x1xf32>
    %cst_2 = arith.constant 9.99999996E-13 : f32
    %11 = vector.broadcast %cst_2 : f32 to vector<16x1xf32>
    %12 = arith.addf %10, %11 : vector<16x1xf32>
    %cst_3 = arith.constant 1.000000e+00 : f32
    %13 = vector.broadcast %cst_3 : f32 to vector<16x1xf32>
    %14 = arith.divf %13, %12 : vector<16x1xf32>
    %15 = vector.broadcast %14 : vector<16x1xf32> to vector<16x10xf32>
    %16 = arith.mulf %0, %15 : vector<16x10xf32>
    %cst_4 = arith.constant dense<0xFF800000> : vector<16xf32>
    %17 = vector.multi_reduction <maximumf>, %16, %cst_4 [1] : vector<16x10xf32> to vector<16xf32>
    %18 = vector.shape_cast %17 : vector<16xf32> to vector<16x1xf32>
    %19 = vector.broadcast %18 : vector<16x1xf32> to vector<16x10xf32>
    %20 = arith.subf %16, %19 : vector<16x10xf32>
    %21 = math.exp %20 : vector<16x10xf32>
    %cst_5 = arith.constant dense<0.000000e+00> : vector<16xf32>
    %22 = vector.multi_reduction <add>, %21, %cst_5 [1] : vector<16x10xf32> to vector<16xf32>
    %23 = vector.shape_cast %22 : vector<16xf32> to vector<16x1xf32>
    %cst_6 = arith.constant 1.000000e+00 : f32
    %24 = vector.broadcast %cst_6 : f32 to vector<16x1xf32>
    %25 = arith.divf %24, %23 : vector<16x1xf32>
    %26 = vector.broadcast %25 : vector<16x1xf32> to vector<16x10xf32>
    %27 = arith.mulf %21, %26 : vector<16x10xf32>
    %28 = vector.extract_strided_slice %27 {offsets = [0, 0], sizes = [8, 10], strides = [1, 1]} : vector<16x10xf32> to vector<8x10xf32>
    %29 = vector.extract_strided_slice %27 {offsets = [8, 0], sizes = [8, 10], strides = [1, 1]} : vector<16x10xf32> to vector<8x10xf32>
    %c0_7 = arith.constant 0 : index
    %c0_8 = arith.constant 0 : index
    %30 = vector.load %arg2[%c0_7, %c0_8] : memref<10x40xf32, #tpu.memory_space<vmem>>, vector<10x40xf32>
    %cst_9 = arith.constant dense<0.000000e+00> : vector<8x40xf32>
    %31 = tpu.matmul %28, %30, %cst_9 {dimension_numbers = #tpu.dot_dimension_numbers<[1], [0], [0], [1], [0, 0, 1, 1], [], []>} : vector<8x10xf32>, vector<10x40xf32>, vector<8x40xf32> -> vector<8x40xf32>
    %32 = tpu.concatenate %29, %29, %29, %29 in 1 : vector<8x10xf32>, vector<8x10xf32>, vector<8x10xf32>, vector<8x10xf32> -> vector<8x40xf32>
    %33 = arith.mulf %31, %32 : vector<8x40xf32>
    %34 = tpu.iota {dimensions = array<i32: 0>} : vector<40x128xi32>
    %35 = tpu.iota {dimensions = array<i32: 1>} : vector<40x128xi32>
    %c10_i32 = arith.constant 10 : i32
    %36 = vector.broadcast %c10_i32 : i32 to vector<40x128xi32>
    %37 = arith.muli %35, %36 : vector<40x128xi32>
    %38 = arith.cmpi sge, %34, %37 : vector<40x128xi32>
    %c10_i32_10 = arith.constant 10 : i32
    %39 = vector.broadcast %c10_i32_10 : i32 to vector<40x128xi32>
    %40 = arith.muli %35, %39 : vector<40x128xi32>
    %c10_i32_11 = arith.constant 10 : i32
    %41 = vector.broadcast %c10_i32_11 : i32 to vector<40x128xi32>
    %42 = arith.addi %40, %41 : vector<40x128xi32>
    %43 = arith.cmpi slt, %34, %42 : vector<40x128xi32>
    %44 = arith.andi %38, %43 : vector<40x128xi1>
    %45 = arith.extui %44 : vector<40x128xi1> to vector<40x128xi32>
    %46 = arith.sitofp %45 : vector<40x128xi32> to vector<40x128xf32>
    %cst_12 = arith.constant dense<0.000000e+00> : vector<8x128xf32>
    %47 = tpu.matmul %33, %46, %cst_12 {dimension_numbers = #tpu.dot_dimension_numbers<[1], [0], [0], [1], [0, 0, 1, 1], [], []>} : vector<8x40xf32>, vector<40x128xf32>, vector<8x128xf32> -> vector<8x128xf32>
    %c0_13 = arith.constant 0 : index
    %c0_14 = arith.constant 0 : index
    %48 = vector.load %arg3[%c0_13, %c0_14] : memref<1x128xf32, #tpu.memory_space<vmem>>, vector<1x128xf32>
    %cst_15 = arith.constant 0.000000e+00 : f32
    %49 = vector.broadcast %cst_15 : f32 to vector<1x128xf32>
    %50 = arith.maximumf %48, %49 : vector<1x128xf32>
    %cst_16 = arith.constant 9.99999996E-13 : f32
    %51 = vector.broadcast %cst_16 : f32 to vector<1x128xf32>
    %52 = arith.addf %50, %51 : vector<1x128xf32>
    %cst_17 = arith.constant 1.000000e+00 : f32
    %53 = vector.broadcast %cst_17 : f32 to vector<1x128xf32>
    %54 = arith.divf %53, %52 : vector<1x128xf32>
    %cst_18 = arith.constant 9.99999996E-13 : f32
    %cst_19 = arith.constant 1.000000e+00 : f32
    %55 = vector.broadcast %cst_18 : f32 to vector<8x128xf32>
    %56 = arith.maximumf %55, %47 : vector<8x128xf32>
    %57 = vector.broadcast %cst_19 : f32 to vector<8x128xf32>
    %58 = arith.minimumf %57, %56 : vector<8x128xf32>
    %59 = math.log %58 : vector<8x128xf32>
    %cst_20 = arith.constant 0.000000e+00 : f32
    %60 = vector.broadcast %cst_20 : f32 to vector<8x128xf32>
    %61 = arith.subf %60, %58 : vector<8x128xf32>
    %62 = math.log1p %61 : vector<8x128xf32>
    %63 = arith.subf %59, %62 : vector<8x128xf32>
    %cst_21 = arith.constant 0.000000e+00 : f32
    %64 = vector.broadcast %cst_21 : f32 to vector<8x128xf32>
    %65 = arith.subf %64, %63 : vector<8x128xf32>
    %66 = vector.broadcast %54 : vector<1x128xf32> to vector<8x128xf32>
    %67 = arith.mulf %65, %66 : vector<8x128xf32>
    %68 = math.exp %67 : vector<8x128xf32>
    %cst_22 = arith.constant 1.000000e+00 : f32
    %69 = vector.broadcast %cst_22 : f32 to vector<8x128xf32>
    %70 = arith.addf %69, %68 : vector<8x128xf32>
    %cst_23 = arith.constant 1.000000e+00 : f32
    %71 = vector.broadcast %cst_23 : f32 to vector<8x128xf32>
    %72 = arith.divf %71, %70 : vector<8x128xf32>
    %c0_24 = arith.constant 0 : index
    %c0_25 = arith.constant 0 : index
    %73 = vector.load %arg4[%c0_24, %c0_25] : memref<8x128xf32, #tpu.memory_space<vmem>>, vector<8x128xf32>
    tpu.vector_store %arg4[%c0_24, %c0_25], %72 {strides = array<i32>} : memref<8x128xf32, #tpu.memory_space<vmem>>, vector<8x128xf32>,
    return
  }
}

</mosaic_0001>

<llo_original>
// kernel: tpu_custom_call.1
$region0: #{tpu_custom_call.1}
  #allocation0 [shape = 'u32[]', space=smem, size = 0x4, offset = 0x4, fixed_abs, tag = 'smem constant byte address 0x4 - core index']
  #allocation1 [shape = 'u32[144,128]{1,0:T(1,128)}', space=vmem, size = 0x12000, scoped, tag = 'internal scratch']
  %s0 = inlined_call_operand.hbm [shape: f32[16,10], index: 0, kind: input, shape index: {}]
  %s1 = inlined_call_operand.vmem [shape: f32[2], index: 1, kind: input, shape index: {}]
  %s2 = inlined_call_operand.hbm [shape: f32[10,40], index: 2, kind: input, shape index: {}]
  %s3 = inlined_call_operand.vmem [shape: f32[1,128], index: 3, kind: input, shape index: {}]
  %s4 = inlined_call_operand.hbm [shape: f32[8,128], index: 4, kind: output, shape index: {}]
  %s5 = sld [smem:[#allocation0]]
  $region38: #{tpu_custom_call.1} parent=0
    _
  %s7 = ssub.s32 1, %s5
  %s8 = scalar_select 0, %s7, %s5
  $region1: #{tpu_custom_call.1} parent=0
    #allocation2 [shape = 'u8[8192]{0}', space=vmem, size = 0x2000, scoped, tag = 'input window, operand 0, single buffered']
    #allocation3 [shape = 's32[1]{0}', space=sflag, size = 0x4, scoped, tag = 'scoped memory for tpu_custom_call.1']
    #allocation4 [shape = 's32[1]{0}', space=sflag, size = 0x4, scoped, tag = 'scoped memory for tpu_custom_call.1']
    #allocation5 [shape = 's32[1]{0}', space=sflag, size = 0x4, scoped, tag = 'scoped memory for tpu_custom_call.1']
    #allocation6 [shape = 'u8[512]{0}', space=smem, size = 0x200, scoped, tag = 'input window, operand 1, single buffered']
    #allocation7 [shape = 'u8[8192]{0}', space=vmem, size = 0x2000, scoped, tag = 'input window, operand 2, single buffered']
    #allocation8 [shape = 's32[1]{0}', space=sflag, size = 0x4, scoped, tag = 'scoped memory for tpu_custom_call.1']
    #allocation9 [shape = 'u8[4096]{0}', space=vmem, size = 0x1000, scoped, tag = 'output window, operand 0, single buffered']
    %9 = vsyncpa [#allocation3], 0
    %10 = vsyncpa [#allocation5], 0
    %11 = vsyncpa [#allocation8], 0
    %12 = vsyncpa [#allocation4], 0
    // Predicated region
    $region2: #{tpu_custom_call.1} parent=1 // pred_check
      _
    $region3: #{tpu_custom_call.1} parent=1 // pred_check_branch
      %14 = sbr.rel (0) target = $region5
    $region4: #{tpu_custom_call.1} parent=1 // pred_region
      %s16 = ssub.s32 256, 256
      %17 = vsyncadd [#allocation3], %s16
      %s18 = sshll.u32 [#allocation2], 4
      %s19 = int_to_ptr.vmem [resolvable:$true] %s18
      %24 = dma.hbm_to_vmem [thread:$0]  %s0, 256, %s19, [#allocation3], 128, 128, 8
    $region5: #{tpu_custom_call.1} parent=1 // pred_fallthru
      _
    // Predicated region
    $region6: #{tpu_custom_call.1} parent=1 // pred_check
      _
    $region7: #{tpu_custom_call.1} parent=1 // pred_check_branch
      %26 = sbr.rel (0) target = $region9
    $region8: #{tpu_custom_call.1} parent=1 // pred_region
      %s28 = ssub.s32 16, 16
      %29 = vsyncadd [#allocation5], %s28
      %s31 = sshll.u32 %s1, 4
      %s32 = int_to_ptr.vmem [resolvable:$true] %s31
      %34 = dma.vmem_to_smem %s32, 16, [#allocation6], [#allocation5]
    $region9: #{tpu_custom_call.1} parent=1 // pred_fallthru
      _
    // Predicated region
    $region10: #{tpu_custom_call.1} parent=1 // pred_check
      _
    $region11: #{tpu_custom_call.1} parent=1 // pred_check_branch
      %36 = sbr.rel (0) target = $region13
    $region12: #{tpu_custom_call.1} parent=1 // pred_region
      %s38 = ssub.s32 256, 256
      %39 = vsyncadd [#allocation8], %s38
      %s40 = sshll.u32 [#allocation7], 4
      %s41 = int_to_ptr.vmem [resolvable:$true] %s40
      %46 = dma.hbm_to_vmem [thread:$0]  %s2, 256, %s41, [#allocation8], 128, 128, 8
    $region13: #{tpu_custom_call.1} parent=1 // pred_fallthru
      _
    // Predicated region
    $region14: #{tpu_custom_call.1} parent=1 // pred_check
      _
    $region15: #{tpu_custom_call.1} parent=1 // pred_check_branch
      %48 = sbr.rel (0) target = $region17
    $region16: #{tpu_custom_call.1} parent=1 // pred_region
      _
    $region17: #{tpu_custom_call.1} parent=1 // pred_fallthru
      _
    // Predicated region
    $region18: #{tpu_custom_call.1} parent=1 // pred_check
      _
    $region19: #{tpu_custom_call.1} parent=1 // pred_check_branch
      %50 = sbr.rel (0) target = $region21
    $region20: #{tpu_custom_call.1} parent=1 // pred_region
      %51 = dma.done [#allocation3], 256
    $region21: #{tpu_custom_call.1} parent=1 // pred_fallthru
      _
    // Predicated region
    $region22: #{tpu_custom_call.1} parent=1 // pred_check
      _
    $region23: #{tpu_custom_call.1} parent=1 // pred_check_branch
      %53 = sbr.rel (0) target = $region25
    $region24: #{tpu_custom_call.1} parent=1 // pred_region
      %54 = dma.done [#allocation5], 16
    $region25: #{tpu_custom_call.1} parent=1 // pred_fallthru
      _
    // Predicated region
    $region26: #{tpu_custom_call.1} parent=1 // pred_check
      _
    $region27: #{tpu_custom_call.1} parent=1 // pred_check_branch
      %56 = sbr.rel (0) target = $region29
    $region28: #{tpu_custom_call.1} parent=1 // pred_region
      %57 = dma.done [#allocation8], 256
    $region29: #{tpu_custom_call.1} parent=1 // pred_fallthru
      _
    %58 = sfence
    %v59 = vld [vmem:[#allocation2] sm:$0xff]
    %v60 = vld [vmem:[#allocation2 + $0x8] sm:$0xff]
    %v61 = vlaneseq
    %v62 = vshrl.u32 %v61, 7
    %v63 = vadd.s32 %v62, 8
    %s64 = sld [smem:[#allocation6 + $0x1]]
    %v65 = vstv %s64
    %vm66 = vcmp.lt.s32.totalorder %v62, 8
    %vm67 = vcmp.lt.s32.totalorder %v63, 8
    %s68 = sld [smem:[#allocation6]]
    %v69 = vstv %s68
    %v70 = vsel %vm66, %v69, %v65
    %v71 = vsel %vm67, %v69, %v65
    %v72 = vmax.f32 %v70, 0.0
    %v73 = vmax.f32 %v71, 0.0
    %v74 = vadd.f32 %v72, 1e-12
    %v75 = vadd.f32 %v73, 1e-12
    %v76 = vrcp.pop %v74
    %v77 = vmul.f32 1.0, %v76
    %v78 = vrcp.pop %v75
    %v79 = vmul.f32 1.0, %v78
    %v80 = vmul.f32 %v59, %v77
    %v81 = vmul.f32 %v60, %v79
    %vm82 = vcmask 80896
    %v83 = vsel %vm82, %v80, -inf
    %84 = vmax.xlane.f32.xlu0 %v83
    %v85 = vpop.xlane.xlu0 %84
    %v86 = vsel %vm82, %v81, -inf
    %87 = vmax.xlane.f32.xlu0 %v86
    %v88 = vpop.xlane.xlu0 %87
    %v89 = vsub.f32 %v80, %v85
    %v90 = vsub.f32 %v81, %v88
    %v91 = vmul.f32 %v89, 1.442695
    %v92 = vpow.pop %v91
    %v93 = vmul.f32 %v90, 1.442695
    %v94 = vpow.pop %v93
    %v95 = vsel %vm82, %v92, 0.0
    %96 = vadd.xlane.f32.xlu0 %v95
    %v97 = vpop.xlane.xlu0 %96
    %v98 = vsel %vm82, %v94, 0.0
    %99 = vadd.xlane.f32.xlu0 %v98
    %v100 = vpop.xlane.xlu0 %99
    %v101 = vrcp.pop %v97
    %v102 = vmul.f32 1.0, %v101
    %v103 = vrcp.pop %v100
    %v104 = vmul.f32 1.0, %v103
    %v105 = vmul.f32 %v92, %v102
    %v106 = vmul.f32 %v94, %v104
    %v107 = vld [vmem:[#allocation7] sm:$0xff]
    %v108 = vld [vmem:[#allocation7 + $0x8] sm:$0x3]
    %v110 = vsel %vm82, %v105, 0
    %vm112 = vcmask 1041408
    %v114 = vsel %vm112, %v108, 0
    %116 = vmatprep.subr.mxu0 0.0
    %117 = vmatpush1.msra.mxu0 0.0
    %118 = vmatprep.subr.mxu0 0.0
    %119 = vmatpush1.msra.mxu0 0.0
    %120 = vmatprep.subr.mxu0 0.0
    %121 = vmatpush1.msra.mxu0 0.0
    %122 = vmatprep.subr.mxu0 0.0
    %123 = vmatpush1.msra.mxu0 0.0
    %124 = vmatprep.subr.mxu0 0.0
    %125 = vmatpush1.msra.mxu0 0.0
    %126 = vmatprep.subr.mxu0 0.0
    %127 = vmatpush1.msra.mxu0 0.0
    %128 = vmatprep.subr.mxu0 0.0
    %129 = vmatpush1.msra.mxu0 0.0
    %130 = vmatprep.subr.mxu0 0.0
    %131 = vmatpush1.msra.mxu0 0.0
    %132 = vmatprep.subr.mxu0 0.0
    %133 = vmatpush1.msra.mxu0 0.0
    %134 = vmatprep.subr.mxu0 0.0
    %135 = vmatpush1.msra.mxu0 0.0
    %136 = vmatprep.subr.mxu0 0.0
    %137 = vmatpush1.msra.mxu0 0.0
    %138 = vmatprep.subr.mxu0 0.0
    %139 = vmatpush1.msra.mxu0 0.0
    %140 = vmatprep.subr.mxu0 0.0
    %141 = vmatpush1.msra.mxu0 0.0
    %142 = vmatprep.subr.mxu0 0.0
    %143 = vmatpush1.msra.mxu0 0.0
    %144 = vmatprep.subr.mxu0 0.0
    %145 = vmatpush1.msra.mxu0 %v114
    %146 = vmatprep.subr.mxu0 0.0
    %147 = vmatpush1.msra.mxu0 %v107
    %148 = vmatprep.subr.mxu0 0.0
    %149 = vmatpush2.msra.mxu0 0.0
    %150 = vmatprep.subr.mxu0 0.0
    %151 = vmatpush2.msra.mxu0 0.0
    %152 = vmatprep.subr.mxu0 0.0
    %153 = vmatpush2.msra.mxu0 0.0
    %154 = vmatprep.subr.mxu0 0.0
    %155 = vmatpush2.msra.mxu0 0.0
    %156 = vmatprep.subr.mxu0 0.0
    %157 = vmatpush2.msra.mxu0 0.0
    %158 = vmatprep.subr.mxu0 0.0
    %159 = vmatpush2.msra.mxu0 0.0
    %160 = vmatprep.subr.mxu0 0.0
    %161 = vmatpush2.msra.mxu0 0.0
    %162 = vmatprep.subr.mxu0 0.0
    %163 = vmatpush2.msra.mxu0 0.0
    %164 = vmatprep.subr.mxu0 0.0
    %165 = vmatpush2.msra.mxu0 0.0
    %166 = vmatprep.subr.mxu0 0.0
    %167 = vmatpush2.msra.mxu0 0.0
    %168 = vmatprep.subr.mxu0 0.0
    %169 = vmatpush2.msra.mxu0 0.0
    %170 = vmatprep.subr.mxu0 0.0
    %171 = vmatpush2.msra.mxu0 0.0
    %172 = vmatprep.subr.mxu0 0.0
    %173 = vmatpush2.msra.mxu0 0.0
    %174 = vmatprep.subr.mxu0 0.0
    %175 = vmatpush2.msra.mxu0 0.0
    %176 = vmatprep.subr.mxu0 0.0
    %177 = vmatpush2.msra.mxu0 0.0
    %178 = vmatprep.subr.mxu0 0.0
    %179 = vmatpush2.msra.mxu0 0.0
    %180 = vmatprep.mubr.f32.mxu0 0.0
    %181 = vmatmul.mubr.f32.gmra.mxu0 %v110
    %v182 = vpop.f32.mrf.mxu0
    %v183 = vadd.f32 0.0, %v182
    %v184 = vpop.f32.mrf.mxu0
    %185 = vdwg.mxu0
    %187 = vrot.lane.b32.xlu0 %v106, 10
    %v188 = vpop.permute.xlu0 %187
    %190 = vrot.lane.b32.xlu0 %v106, 20
    %v191 = vpop.permute.xlu0 %190
    %193 = vrot.lane.b32.xlu0 %v106, 30
    %v194 = vpop.permute.xlu0 %193
    %v196 = vsel %vm82, %v106, %v188
    %vm197 = vcmask 162816
    %v198 = vsel %vm197, %v196, %v191
    %vm199 = vcmask 244736
    %v200 = vsel %vm199, %v198, %v194
    %v201 = vmul.f32 %v183, %v200
    %v202 = vadd.s32 %v62, 16
    %v203 = vadd.s32 %v62, 24
    %v204 = vadd.s32 %v62, 32
    %v205 = vlaneseq
    %v206 = vand.u32 %v205, 127
    %v207 = vmul.u32 %v206, 10
    %vm208 = vcmp.ge.s32.totalorder %v62, %v207
    %vm209 = vcmp.ge.s32.totalorder %v63, %v207
    %vm210 = vcmp.ge.s32.totalorder %v202, %v207
    %vm211 = vcmp.ge.s32.totalorder %v203, %v207
    %vm212 = vcmp.ge.s32.totalorder %v204, %v207
    %v213 = vadd.s32 %v207, 10
    %vm214 = vcmp.lt.s32.totalorder %v62, %v213
    %vm215 = vcmp.lt.s32.totalorder %v63, %v213
    %vm216 = vcmp.lt.s32.totalorder %v202, %v213
    %vm217 = vcmp.lt.s32.totalorder %v203, %v213
    %vm218 = vcmp.lt.s32.totalorder %v204, %v213
    %vm219 = vmand %vm208, %vm214
    %vm220 = vmand %vm209, %vm215
    %vm221 = vmand %vm210, %vm216
    %vm222 = vmand %vm211, %vm217
    %vm223 = vmand %vm212, %vm218
    %v224 = vsel %vm219, 1, 0
    %v225 = vsel %vm220, 1, 0
    %v226 = vsel %vm221, 1, 0
    %v227 = vsel %vm222, 1, 0
    %v228 = vsel %vm223, 1, 0
    %v229 = vcvt.s32.f32 %v224
    %v230 = vcvt.s32.f32 %v225
    %v231 = vcvt.s32.f32 %v226
    %v232 = vcvt.s32.f32 %v227
    %v233 = vcvt.s32.f32 %v228
    %vm234 = vcmask 326656
    %v236 = vsel %vm234, %v201, 0
    %238 = vmatprep.subr.mxu0 0.0
    %239 = vmatpush1.msra.mxu0 0.0
    %240 = vmatprep.subr.mxu0 0.0
    %241 = vmatpush1.msra.mxu0 0.0
    %242 = vmatprep.subr.mxu0 0.0
    %243 = vmatpush1.msra.mxu0 0.0
    %244 = vmatprep.subr.mxu0 0.0
    %245 = vmatpush1.msra.mxu0 0.0
    %246 = vmatprep.subr.mxu0 0.0
    %247 = vmatpush1.msra.mxu0 0.0
    %248 = vmatprep.subr.mxu0 0.0
    %249 = vmatpush1.msra.mxu0 0.0
    %250 = vmatprep.subr.mxu0 0.0
    %251 = vmatpush1.msra.mxu0 0.0
    %252 = vmatprep.subr.mxu0 0.0
    %253 = vmatpush1.msra.mxu0 0.0
    %254 = vmatprep.subr.mxu0 0.0
    %255 = vmatpush1.msra.mxu0 0.0
    %256 = vmatprep.subr.mxu0 0.0
    %257 = vmatpush1.msra.mxu0 0.0
    %258 = vmatprep.subr.mxu0 0.0
    %259 = vmatpush1.msra.mxu0 0.0
    %260 = vmatprep.subr.mxu0 0.0
    %261 = vmatpush1.msra.mxu0 %v233
    %262 = vmatprep.subr.mxu0 0.0
    %263 = vmatpush1.msra.mxu0 %v232
    %264 = vmatprep.subr.mxu0 0.0
    %265 = vmatpush1.msra.mxu0 %v231
    %266 = vmatprep.subr.mxu0 0.0
    %267 = vmatpush1.msra.mxu0 %v230
    %268 = vmatprep.subr.mxu0 0.0
    %269 = vmatpush1.msra.mxu0 %v229
    %270 = vmatprep.subr.mxu0 0.0
    %271 = vmatpush2.msra.mxu0 0.0
    %272 = vmatprep.subr.mxu0 0.0
    %273 = vmatpush2.msra.mxu0 0.0
    %274 = vmatprep.subr.mxu0 0.0
    %275 = vmatpush2.msra.mxu0 0.0
    %276 = vmatprep.subr.mxu0 0.0
    %277 = vmatpush2.msra.mxu0 0.0
    %278 = vmatprep.subr.mxu0 0.0
    %279 = vmatpush2.msra.mxu0 0.0
    %280 = vmatprep.subr.mxu0 0.0
    %281 = vmatpush2.msra.mxu0 0.0
    %282 = vmatprep.subr.mxu0 0.0
    %283 = vmatpush2.msra.mxu0 0.0
    %284 = vmatprep.subr.mxu0 0.0
    %285 = vmatpush2.msra.mxu0 0.0
    %286 = vmatprep.subr.mxu0 0.0
    %287 = vmatpush2.msra.mxu0 0.0
    %288 = vmatprep.subr.mxu0 0.0
    %289 = vmatpush2.msra.mxu0 0.0
    %290 = vmatprep.subr.mxu0 0.0
    %291 = vmatpush2.msra.mxu0 0.0
    %292 = vmatprep.subr.mxu0 0.0
    %293 = vmatpush2.msra.mxu0 0.0
    %294 = vmatprep.subr.mxu0 0.0
    %295 = vmatpush2.msra.mxu0 0.0
    %296 = vmatprep.subr.mxu0 0.0
    %297 = vmatpush2.msra.mxu0 0.0
    %298 = vmatprep.subr.mxu0 0.0
    %299 = vmatpush2.msra.mxu0 0.0
    %300 = vmatprep.subr.mxu0 0.0
    %301 = vmatpush2.msra.mxu0 0.0
    %302 = vmatprep.mubr.f32.mxu0 0.0
    %303 = vmatmul.mubr.f32.gmra.mxu0 %v236
    %v304 = vpop.f32.mrf.mxu0
    %v305 = vadd.f32 0.0, %v304
    %v306 = vpop.f32.mrf.mxu0
    %307 = vdwg.mxu0
    %v308 = vld [vmem:[%s3] sm:$0x1]
    %v309 = vmax.f32 %v308, 0.0
    %v310 = vadd.f32 %v309, 1e-12
    %v311 = vrcp.pop %v310
    %v312 = vmul.f32 1.0, %v311
    %v313 = vmax.f32 %v305, 1e-12
    %v314 = vmin.f32 %v313, 1.0
    %v315 = vlog2.pop %v314
    %v316 = vmul.f32 %v315, 0.6931472
    %v317 = vsub.f32 0.0, %v314
    %v318 = vadd.f32 %v317, 1.0
    %v319 = vlog2.pop %v318
    %v320 = vmul.f32 %v319, 0.6931472
    %v321 = vmul.f32 -0.5, %v317
    %v322 = vadd.f32 %v321, 1.0
    %v323 = vmul.f32 %v322, %v317
    %v324 = vand.u32 2147483647, %v317
    %vm325 = vcmp.lt.f32.partialorder %v324, 0.0004427343
    %v326 = vsel %vm325, %v323, %v320
    %v327 = vsub.f32 %v316, %v326
    %v328 = vsub.f32 0.0, %v327
    %v330 = vlaneseq
    %v331 = vshrl.u32 %v330, 7
    %v332 = vsub.s32 0, %v331
    %v333 = vrot.slane %v312, %v332
    %v335 = vmul.f32 %v328, %v333
    %v336 = vmul.f32 %v335, 1.442695
    %v337 = vpow.pop %v336
    %v338 = vadd.f32 %v337, 1.0
    %v339 = vrcp.pop %v338
    %v340 = vmul.f32 1.0, %v339
    %341 = vst [vmem:[#allocation9] sm:$0xff] %v340
    // Predicated region
    $region30: #{tpu_custom_call.1} parent=1 // pred_check
      _
    $region31: #{tpu_custom_call.1} parent=1 // pred_check_branch
      %343 = sbr.rel (0) target = $region33
    $region32: #{tpu_custom_call.1} parent=1 // pred_region
      %s345 = ssub.s32 128, 128
      %346 = vsyncadd [#allocation4], %s345
      %s348 = sshll.u32 [#allocation9], 4
      %s349 = int_to_ptr.vmem [resolvable:$true] %s348
      %351 = dma.vmem_to_hbm [thread:$0]  %s349, 128, %s4, [#allocation4]
    $region33: #{tpu_custom_call.1} parent=1 // pred_fallthru
      _
    // Predicated region
    $region34: #{tpu_custom_call.1} parent=1 // pred_check
      _
    $region35: #{tpu_custom_call.1} parent=1 // pred_check_branch
      %353 = sbr.rel (0) target = $region37
    $region36: #{tpu_custom_call.1} parent=1 // pred_region
      %354 = dma.done [#allocation4], 128
    $region37: #{tpu_custom_call.1} parent=1 // pred_fallthru
      _
    %355 = vsyncpa [#allocation3], 1
    %356 = vsyncpa [#allocation8], 1
    %357 = vsyncpa [#allocation4], 1
    %358 = vsyncpa [#allocation5], 1

</llo_original>
